<compile_context>
chip_gen: v7x
topology: tpu7x:2x2x1
jax: 0.10.0
libtpu: 0.0.40
codegen_flags: <defaults>
</compile_context>

<pallas_src>
import jax
import jax.numpy as jnp
from jax import lax
from jax.experimental import pallas as pl
from jax.experimental.pallas import tpu as pltpu

# 3x3 tap order shared by the im2col weight layout and the in-kernel shift/mask tables.
_TAPS = tuple((ky, kx) for ky in range(3) for kx in range(3))


def _fold_bn(w_oihw, bn, eps):
    """Folds eval-mode BatchNorm into conv weight/bias (f32)."""
    gamma, beta, mean, var = bn
    scale = gamma / jnp.sqrt(var + eps)
    w = (w_oihw * scale[:, None, None, None]).astype(jnp.float32)
    b = (beta - mean * scale).astype(jnp.float32)
    return w, b


def c3_forward(x_nchw, params, *, n, shortcut=True, eps=1e-5):
    """Fused C3 forward.  x_nchw: (N, c1, H, W) float32.  Returns (N, c2, H, W)."""
    N, c1, H, W = x_nchw.shape
    HW = H * W

    # ---- cv1 / cv2 merged into a single (2c_, c1) matmul weight --------------------
    w_cv1, b_cv1 = _fold_bn(params["cv1_w"], params["cv1_bn"], eps)
    w_cv2, b_cv2 = _fold_bn(params["cv2_w"], params["cv2_bn"], eps)
    c_ = w_cv1.shape[0]
    w12 = jnp.concatenate([w_cv1[:, :, 0, 0], w_cv2[:, :, 0, 0]], axis=0)     # (2c_, c1)
    b12 = jnp.concatenate([b_cv1, b_cv2], axis=0)[:, None]                    # (2c_, 1)

    # ---- bottleneck weights, stacked over the n blocks ------------------------------
    wm1_l, bm1_l, wm2_l, bm2_l = [], [], [], []
    for i in range(n):
        wa, ba = _fold_bn(params["m_cv1_w"][i],
                          tuple(p[i] for p in params["m_cv1_bn"]), eps)
        wb, bb = _fold_bn(params["m_cv2_w"][i],
                          tuple(p[i] for p in params["m_cv2_bn"]), eps)
        wm1_l.append(wa[:, :, 0, 0])                                          # (c_, c_)
        bm1_l.append(ba[:, None])                                             # (c_, 1)
        # im2col weight: tap-major column blocks, same order as _TAPS.
        wm2_l.append(jnp.concatenate([wb[:, :, ky, kx] for ky, kx in _TAPS],
                                     axis=1))                                 # (c_, 9c_)
        bm2_l.append(bb[:, None])
    wm1 = jnp.stack(wm1_l, axis=0)                                            # (n, c_, c_)
    bm1 = jnp.stack(bm1_l, axis=0)                                            # (n, c_, 1)
    wm2 = jnp.stack(wm2_l, axis=0)                                            # (n, c_, 9c_)
    bm2 = jnp.stack(bm2_l, axis=0)                                            # (n, c_, 1)

    # ---- cv3 (channel concat is a free, tile-aligned sublane concat in this layout) -
    w_cv3, b_cv3 = _fold_bn(params["cv3_w"], params["cv3_bn"], eps)
    c2 = w_cv3.shape[0]
    w3 = w_cv3[:, :, 0, 0]                                                    # (c2, 2c_)
    b3 = b_cv3[:, None]                                                       # (c2, 1)

    # ---- per-tap lane-roll shifts + validity masks (reproduce the conv zero padding) -
    # Feature maps live as (C, H*W) with p = r*W + w on the lane axis; tap (dy, dx)
    # reads source pixel p + dy*W + dx, i.e. a lane roll by -(dy*W + dx) (np.roll
    # convention), plus a 0/1 mask killing positions whose source falls off the image.
    pos = jnp.arange(HW)
    rr, ww = pos // W, pos % W
    shifts, mask_l = [], []
    for ky, kx in _TAPS:
        dy, dx = ky - 1, kx - 1
        ok = ((rr + dy >= 0) & (rr + dy < H) & (ww + dx >= 0) & (ww + dx < W))
        mask_l.append(ok.astype(jnp.float32))
        shifts.append((-(dy * W + dx)) % HW)
    masks = jnp.stack(mask_l, axis=0)[:, None, :]                             # (9, 1, HW)

    # bf16 MXU operands; biases / masks / accumulation stay f32.
    w12, wm1, wm2, w3 = (a.astype(jnp.bfloat16) for a in (w12, wm1, wm2, w3))

    def _silu(v):
        # sigmoid = 1/(1+exp(-v)): exp + approx reciprocal both run on the EUP slot,
        # keeping the VALU free.  f32 in / f32 out.
        return v * pl.reciprocal(1.0 + jnp.exp(-v), approx=True)

    def kernel(x_ref, mask_ref, w12_ref, b12_ref, wm1_ref, bm1_ref,
               wm2_ref, bm2_ref, w3_ref, b3_ref, o_ref):
        x = x_ref[0].astype(jnp.bfloat16)                                     # (c1, HW)

        # cv1 + cv2 as one MXU matmul, then a free (sublane-aligned) split.
        y12 = _silu(jnp.dot(w12_ref[...], x, preferred_element_type=jnp.float32)
                    + b12_ref[...])                                           # (2c_, HW) f32
        y1 = y12[:c_, :]                                                      # m branch
        y2 = y12[c_:, :]                                                      # cv2 branch

        msk = [mask_ref[k] for k in range(9)]                                 # hoisted loads

        def bottleneck(i, y1):
            t = _silu(jnp.dot(wm1_ref[i], y1.astype(jnp.bfloat16),
                              preferred_element_type=jnp.float32)
                      + bm1_ref[i])                                           # (c_, HW) f32
            # 3x3 conv: 9 lane-rolled + masked taps -> ONE (c_, 9c_) @ (9c_, HW) matmul.
            taps = []
            for k, s in enumerate(shifts):
                v = t if s == 0 else pltpu.roll(t, s, axis=1)
                taps.append(v * msk[k])
            patch = jnp.concatenate(taps, axis=0).astype(jnp.bfloat16)        # (9c_, HW)
            t = _silu(jnp.dot(wm2_ref[i], patch,
                              preferred_element_type=jnp.float32)
                      + bm2_ref[i])
            return y1 + t if shortcut else t

        y1 = lax.fori_loop(0, n, bottleneck, y1)

        # cv3 on cat([y1, y2], C): sublane concat is tile-aligned (free), one matmul.
        ycat = jnp.concatenate([y1, y2], axis=0).astype(jnp.bfloat16)         # (2c_, HW)
        out = _silu(jnp.dot(w3_ref[...], ycat, preferred_element_type=jnp.float32)
                    + b3_ref[...])                                            # (c2, HW) f32
        o_ref[...] = out.reshape(1, c2, HW).astype(o_ref.dtype)               # lane-dense store

    def _const_spec(a):
        nd = a.ndim
        return pl.BlockSpec(a.shape, lambda i, _nd=nd: (0,) * _nd)

    x_flat = x_nchw.reshape(N, c1, HW)            # free row-major reshape (still NCHW)
    out_flat = pl.pallas_call(
        kernel,
        out_shape=jax.ShapeDtypeStruct((N, c2, HW), x_nchw.dtype),
        grid_spec=pltpu.PrefetchScalarGridSpec(
            num_scalar_prefetch=0,
            grid=(N,),
            in_specs=[
                pl.BlockSpec((1, c1, HW), lambda i: (i, 0, 0)),   # x, one image per step
                _const_spec(masks),
                _const_spec(w12), _const_spec(b12),
                _const_spec(wm1), _const_spec(bm1),
                _const_spec(wm2), _const_spec(bm2),
                _const_spec(w3), _const_spec(b3),
            ],
            out_specs=pl.BlockSpec((1, c2, HW), lambda i: (i, 0, 0)),
        ),
        compiler_params=pltpu.CompilerParams(
            dimension_semantics=("parallel",),
            vmem_limit_bytes=32 * 1024 * 1024),
    )(x_flat, masks, w12, b12, wm1, bm1, wm2, bm2, w3, b3)
    return out_flat.reshape(N, c2, H, W)


# -------------------------------------------------------------------------------------
# Pure-JAX reference (lax.conv in NCHW, mirroring the PyTorch module op by op, f32).
# -------------------------------------------------------------------------------------
def _conv_bn_silu_ref(x, w_oihw, bn, eps, pad):
    gamma, beta, mean, var = bn
    y = lax.conv_general_dilated(
        x, w_oihw, window_strides=(1, 1),
        padding=[(pad, pad), (pad, pad)],
        dimension_numbers=("NCHW", "OIHW", "NCHW"),
        precision=lax.Precision.HIGHEST)
    scale = (gamma / jnp.sqrt(var + eps))[None, :, None, None]
    bias = (beta - mean * gamma / jnp.sqrt(var + eps))[None, :, None, None]
    y = y * scale + bias
    return y * jax.nn.sigmoid(y)


def c3_reference(x, params, *, n, shortcut=True, eps=1e-5):
    y1 = _conv_bn_silu_ref(x, params["cv1_w"], params["cv1_bn"], eps, 0)
    for i in range(n):
        t = _conv_bn_silu_ref(y1, params["m_cv1_w"][i],
                              tuple(p[i] for p in params["m_cv1_bn"]), eps, 0)
        t = _conv_bn_silu_ref(t, params["m_cv2_w"][i],
                              tuple(p[i] for p in params["m_cv2_bn"]), eps, 1)
        y1 = y1 + t if shortcut else t
    y2 = _conv_bn_silu_ref(x, params["cv2_w"], params["cv2_bn"], eps, 0)
    cat = jnp.concatenate([y1, y2], axis=1)
    return _conv_bn_silu_ref(cat, params["cv3_w"], params["cv3_bn"], eps, 0)


if __name__ == "__main__":
    key = jax.random.PRNGKey(0)
    N, c1, c2, H, W = 2, 16, 16, 16, 16
    n_blocks = 2
    e = 0.5
    c_ = int(c2 * e)            # 8

    def bn_init(k, shape):
        ks = jax.random.split(k, 4)
        gamma = 1.0 + 0.1 * jax.random.normal(ks[0], shape, jnp.float32)
        beta = 0.1 * jax.random.normal(ks[1], shape, jnp.float32)
        mean = 0.1 * jax.random.normal(ks[2], shape, jnp.float32)
        var = 0.5 + jax.random.uniform(ks[3], shape, dtype=jnp.float32)
        return (gamma, beta, mean, var)

    ks = jax.random.split(key, 12)
    x = jax.random.normal(ks[0], (N, c1, H, W), jnp.float32)   # NCHW, like the module

    params = {
        "cv1_w": 0.2 * jax.random.normal(ks[1], (c_, c1, 1, 1), jnp.float32),
        "cv1_bn": bn_init(ks[2], (c_,)),
        "cv2_w": 0.2 * jax.random.normal(ks[3], (c_, c1, 1, 1), jnp.float32),
        "cv2_bn": bn_init(ks[4], (c_,)),
        "cv3_w": 0.2 * jax.random.normal(ks[5], (c2, 2 * c_, 1, 1), jnp.float32),
        "cv3_bn": bn_init(ks[6], (c2,)),
        "m_cv1_w": 0.2 * jax.random.normal(ks[7], (n_blocks, c_, c_, 1, 1), jnp.float32),
        "m_cv1_bn": bn_init(ks[8], (n_blocks, c_)),
        "m_cv2_w": 0.2 * jax.random.normal(ks[9], (n_blocks, c_, c_, 3, 3), jnp.float32),
        "m_cv2_bn": bn_init(ks[10], (n_blocks, c_)),
    }

    y = c3_forward(x, params, n=n_blocks, shortcut=True)
    y = jax.block_until_ready(y)

    y_ref = c3_reference(x, params, n=n_blocks, shortcut=True)
    assert y.shape == (N, c2, H, W)
    err = float(jnp.max(jnp.abs(y - y_ref)))
    # bf16 MXU operands (weights + activations) vs. the f32 reference -> bf16-level
    # tolerance; accumulation, biases, SiLU and the residual chain stay f32 in-kernel.
    assert jnp.allclose(y, y_ref, atol=3e-2, rtol=3e-2), f"max abs err = {err}"

    print("KERNEL_OK")
</pallas_src>

<mosaic_0001>
module attributes {stable_mosaic.version = 11 : i64} {
  func.func @kernel(%arg0: i32, %arg1: memref<1x16x256xf32, #tpu.memory_space<vmem>>, %arg2: memref<9x1x256xf32, #tpu.memory_space<vmem>>, %arg3: memref<16x16xbf16, #tpu.memory_space<vmem>>, %arg4: memref<16x1xf32, #tpu.memory_space<vmem>>, %arg5: memref<2x8x8xbf16, #tpu.memory_space<vmem>>, %arg6: memref<2x8x1xf32, #tpu.memory_space<vmem>>, %arg7: memref<2x8x72xbf16, #tpu.memory_space<vmem>>, %arg8: memref<2x8x1xf32, #tpu.memory_space<vmem>>, %arg9: memref<16x16xbf16, #tpu.memory_space<vmem>>, %arg10: memref<16x1xf32, #tpu.memory_space<vmem>>, %arg11: memref<1x16x256xf32, #tpu.memory_space<vmem>>) attributes {dimension_semantics = [#tpu.dimension_semantics<parallel>], iteration_bounds = array<i64: 2>, scalar_prefetch = 0 : i64, scratch_operands = 0 : i64, tpu.core_type = #tpu.core_type<tc>, window_params = [{transform_indices = @transform_0, window_bounds = array<i64: 1, 16, 256>}, {pipeline_mode = #tpu.pipeline_mode<synchronous>, transform_indices = @transform_1, window_bounds = array<i64: 9, 1, 256>}, {pipeline_mode = #tpu.pipeline_mode<synchronous>, transform_indices = @transform_2, window_bounds = array<i64: 16, 16>}, {pipeline_mode = #tpu.pipeline_mode<synchronous>, transform_indices = @transform_3, window_bounds = array<i64: 16, 1>}, {pipeline_mode = #tpu.pipeline_mode<synchronous>, transform_indices = @transform_4, window_bounds = array<i64: 2, 8, 8>}, {pipeline_mode = #tpu.pipeline_mode<synchronous>, transform_indices = @transform_5, window_bounds = array<i64: 2, 8, 1>}, {pipeline_mode = #tpu.pipeline_mode<synchronous>, transform_indices = @transform_6, window_bounds = array<i64: 2, 8, 72>}, {pipeline_mode = #tpu.pipeline_mode<synchronous>, transform_indices = @transform_7, window_bounds = array<i64: 2, 8, 1>}, {pipeline_mode = #tpu.pipeline_mode<synchronous>, transform_indices = @transform_8, window_bounds = array<i64: 16, 16>}, {pipeline_mode = #tpu.pipeline_mode<synchronous>, transform_indices = @transform_9, window_bounds = array<i64: 16, 1>}, {transform_indices = @transform_10, window_bounds = array<i64: 1, 16, 256>}]} {
    %c0 = arith.constant 0 : index
    %c0_0 = arith.constant 0 : index
    %c0_1 = arith.constant 0 : index
    %0 = vector.load %arg1[%c0, %c0_0, %c0_1] : memref<1x16x256xf32, #tpu.memory_space<vmem>>, vector<1x16x256xf32>
    %1 = vector.shape_cast %0 : vector<1x16x256xf32> to vector<16x256xf32>
    %2 = arith.truncf %1 : vector<16x256xf32> to vector<16x256xbf16>
    %c0_2 = arith.constant 0 : index
    %c0_3 = arith.constant 0 : index
    %3 = vector.load %arg3[%c0_2, %c0_3] : memref<16x16xbf16, #tpu.memory_space<vmem>>, vector<16x16xbf16>
    %cst = arith.constant dense<0.000000e+00> : vector<16x256xf32>
    %4 = tpu.matmul %3, %2, %cst {dimension_numbers = #tpu.dot_dimension_numbers<[1], [0], [0], [1], [0, 0, 1, 1], [], []>} : vector<16x16xbf16>, vector<16x256xbf16>, vector<16x256xf32> -> vector<16x256xf32>
    %c0_4 = arith.constant 0 : index
    %c0_5 = arith.constant 0 : index
    %5 = vector.load %arg4[%c0_4, %c0_5] : memref<16x1xf32, #tpu.memory_space<vmem>>, vector<16x1xf32>
    %6 = vector.broadcast %5 : vector<16x1xf32> to vector<16x256xf32>
    %7 = arith.addf %4, %6 : vector<16x256xf32>
    %cst_6 = arith.constant 0.000000e+00 : f32
    %8 = vector.broadcast %cst_6 : f32 to vector<16x256xf32>
    %9 = arith.subf %8, %7 : vector<16x256xf32>
    %10 = math.exp %9 : vector<16x256xf32>
    %cst_7 = arith.constant 1.000000e+00 : f32
    %11 = vector.broadcast %cst_7 : f32 to vector<16x256xf32>
    %12 = arith.addf %11, %10 : vector<16x256xf32>
    %13 = tpu.reciprocal %12 {approx = true} : vector<16x256xf32> -> vector<16x256xf32>
    %14 = arith.mulf %7, %13 : vector<16x256xf32>
    %15 = vector.extract_strided_slice %14 {offsets = [0, 0], sizes = [8, 256], strides = [1, 1]} : vector<16x256xf32> to vector<8x256xf32>
    %16 = vector.extract_strided_slice %14 {offsets = [8, 0], sizes = [8, 256], strides = [1, 1]} : vector<16x256xf32> to vector<8x256xf32>
    %c0_8 = arith.constant 0 : index
    %c0_9 = arith.constant 0 : index
    %c0_10 = arith.constant 0 : index
    %17 = vector.load %arg2[%c0_8, %c0_9, %c0_10] : memref<9x1x256xf32, #tpu.memory_space<vmem>>, vector<1x1x256xf32>
    %18 = vector.shape_cast %17 : vector<1x1x256xf32> to vector<1x256xf32>
    %c1 = arith.constant 1 : index
    %c0_11 = arith.constant 0 : index
    %c0_12 = arith.constant 0 : index
    %19 = vector.load %arg2[%c1, %c0_11, %c0_12] : memref<9x1x256xf32, #tpu.memory_space<vmem>>, vector<1x1x256xf32>
    %20 = vector.shape_cast %19 : vector<1x1x256xf32> to vector<1x256xf32>
    %c2 = arith.constant 2 : index
    %c0_13 = arith.constant 0 : index
    %c0_14 = arith.constant 0 : index
    %21 = vector.load %arg2[%c2, %c0_13, %c0_14] : memref<9x1x256xf32, #tpu.memory_space<vmem>>, vector<1x1x256xf32>
    %22 = vector.shape_cast %21 : vector<1x1x256xf32> to vector<1x256xf32>
    %c3 = arith.constant 3 : index
    %c0_15 = arith.constant 0 : index
    %c0_16 = arith.constant 0 : index
    %23 = vector.load %arg2[%c3, %c0_15, %c0_16] : memref<9x1x256xf32, #tpu.memory_space<vmem>>, vector<1x1x256xf32>
    %24 = vector.shape_cast %23 : vector<1x1x256xf32> to vector<1x256xf32>
    %c4 = arith.constant 4 : index
    %c0_17 = arith.constant 0 : index
    %c0_18 = arith.constant 0 : index
    %25 = vector.load %arg2[%c4, %c0_17, %c0_18] : memref<9x1x256xf32, #tpu.memory_space<vmem>>, vector<1x1x256xf32>
    %26 = vector.shape_cast %25 : vector<1x1x256xf32> to vector<1x256xf32>
    %c5 = arith.constant 5 : index
    %c0_19 = arith.constant 0 : index
    %c0_20 = arith.constant 0 : index
    %27 = vector.load %arg2[%c5, %c0_19, %c0_20] : memref<9x1x256xf32, #tpu.memory_space<vmem>>, vector<1x1x256xf32>
    %28 = vector.shape_cast %27 : vector<1x1x256xf32> to vector<1x256xf32>
    %c6 = arith.constant 6 : index
    %c0_21 = arith.constant 0 : index
    %c0_22 = arith.constant 0 : index
    %29 = vector.load %arg2[%c6, %c0_21, %c0_22] : memref<9x1x256xf32, #tpu.memory_space<vmem>>, vector<1x1x256xf32>
    %30 = vector.shape_cast %29 : vector<1x1x256xf32> to vector<1x256xf32>
    %c7 = arith.constant 7 : index
    %c0_23 = arith.constant 0 : index
    %c0_24 = arith.constant 0 : index
    %31 = vector.load %arg2[%c7, %c0_23, %c0_24] : memref<9x1x256xf32, #tpu.memory_space<vmem>>, vector<1x1x256xf32>
    %32 = vector.shape_cast %31 : vector<1x1x256xf32> to vector<1x256xf32>
    %c8 = arith.constant 8 : index
    %c0_25 = arith.constant 0 : index
    %c0_26 = arith.constant 0 : index
    %33 = vector.load %arg2[%c8, %c0_25, %c0_26] : memref<9x1x256xf32, #tpu.memory_space<vmem>>, vector<1x1x256xf32>
    %34 = vector.shape_cast %33 : vector<1x1x256xf32> to vector<1x256xf32>
    %c0_i32 = arith.constant 0 : i32
    %c2_i32 = arith.constant 2 : i32
    %35 = arith.addi %c0_i32, %c2_i32 : i32
    %c1_i32 = arith.constant 1 : i32
    %36 = scf.for %arg12 = %c0_i32 to %35 step %c1_i32 iter_args(%arg13 = %15) -> (vector<8x256xf32>)  : i32 {
      %53 = arith.index_cast %arg12 : i32 to index
      %c0_38 = arith.constant 0 : index
      %c0_39 = arith.constant 0 : index
      %54 = vector.load %arg5[%53, %c0_38, %c0_39] : memref<2x8x8xbf16, #tpu.memory_space<vmem>>, vector<1x8x8xbf16>
      %55 = vector.shape_cast %54 : vector<1x8x8xbf16> to vector<8x8xbf16>
      %56 = arith.truncf %arg13 : vector<8x256xf32> to vector<8x256xbf16>
      %cst_40 = arith.constant dense<0.000000e+00> : vector<8x256xf32>
      %57 = tpu.matmul %55, %56, %cst_40 {dimension_numbers = #tpu.dot_dimension_numbers<[1], [0], [0], [1], [0, 0, 1, 1], [], []>} : vector<8x8xbf16>, vector<8x256xbf16>, vector<8x256xf32> -> vector<8x256xf32>
      %58 = arith.index_cast %arg12 : i32 to index
      %c0_41 = arith.constant 0 : index
      %c0_42 = arith.constant 0 : index
      %59 = vector.load %arg6[%58, %c0_41, %c0_42] : memref<2x8x1xf32, #tpu.memory_space<vmem>>, vector<1x8x1xf32>
      %60 = vector.shape_cast %59 : vector<1x8x1xf32> to vector<8x1xf32>
      %61 = vector.broadcast %60 : vector<8x1xf32> to vector<8x256xf32>
      %62 = arith.addf %57, %61 : vector<8x256xf32>
      %cst_43 = arith.constant 0.000000e+00 : f32
      %63 = vector.broadcast %cst_43 : f32 to vector<8x256xf32>
      %64 = arith.subf %63, %62 : vector<8x256xf32>
      %65 = math.exp %64 : vector<8x256xf32>
      %cst_44 = arith.constant 1.000000e+00 : f32
      %66 = vector.broadcast %cst_44 : f32 to vector<8x256xf32>
      %67 = arith.addf %66, %65 : vector<8x256xf32>
      %68 = tpu.reciprocal %67 {approx = true} : vector<8x256xf32> -> vector<8x256xf32>
      %69 = arith.mulf %62, %68 : vector<8x256xf32>
      %c17_i32 = arith.constant 17 : i32
      %70 = tpu.dynamic_rotate %69 by %c17_i32 dim 1 : vector<8x256xf32>, i32 -> vector<8x256xf32>
      %71 = vector.broadcast %18 : vector<1x256xf32> to vector<8x256xf32>
      %72 = arith.mulf %70, %71 : vector<8x256xf32>
      %c16_i32 = arith.constant 16 : i32
      %73 = tpu.dynamic_rotate %69 by %c16_i32 dim 1 : vector<8x256xf32>, i32 -> vector<8x256xf32>
      %74 = vector.broadcast %20 : vector<1x256xf32> to vector<8x256xf32>
      %75 = arith.mulf %73, %74 : vector<8x256xf32>
      %c15_i32 = arith.constant 15 : i32
      %76 = tpu.dynamic_rotate %69 by %c15_i32 dim 1 : vector<8x256xf32>, i32 -> vector<8x256xf32>
      %77 = vector.broadcast %22 : vector<1x256xf32> to vector<8x256xf32>
      %78 = arith.mulf %76, %77 : vector<8x256xf32>
      %c1_i32_45 = arith.constant 1 : i32
      %79 = tpu.dynamic_rotate %69 by %c1_i32_45 dim 1 : vector<8x256xf32>, i32 -> vector<8x256xf32>
      %80 = vector.broadcast %24 : vector<1x256xf32> to vector<8x256xf32>
      %81 = arith.mulf %79, %80 : vector<8x256xf32>
      %82 = vector.broadcast %26 : vector<1x256xf32> to vector<8x256xf32>
      %83 = arith.mulf %69, %82 : vector<8x256xf32>
      %c255_i32 = arith.constant 255 : i32
      %84 = tpu.dynamic_rotate %69 by %c255_i32 dim 1 : vector<8x256xf32>, i32 -> vector<8x256xf32>
      %85 = vector.broadcast %28 : vector<1x256xf32> to vector<8x256xf32>
      %86 = arith.mulf %84, %85 : vector<8x256xf32>
      %c241_i32 = arith.constant 241 : i32
      %87 = tpu.dynamic_rotate %69 by %c241_i32 dim 1 : vector<8x256xf32>, i32 -> vector<8x256xf32>
      %88 = vector.broadcast %30 : vector<1x256xf32> to vector<8x256xf32>
      %89 = arith.mulf %87, %88 : vector<8x256xf32>
      %c240_i32 = arith.constant 240 : i32
      %90 = tpu.dynamic_rotate %69 by %c240_i32 dim 1 : vector<8x256xf32>, i32 -> vector<8x256xf32>
      %91 = vector.broadcast %32 : vector<1x256xf32> to vector<8x256xf32>
      %92 = arith.mulf %90, %91 : vector<8x256xf32>
      %c239_i32 = arith.constant 239 : i32
      %93 = tpu.dynamic_rotate %69 by %c239_i32 dim 1 : vector<8x256xf32>, i32 -> vector<8x256xf32>
      %94 = vector.broadcast %34 : vector<1x256xf32> to vector<8x256xf32>
      %95 = arith.mulf %93, %94 : vector<8x256xf32>
      %96 = tpu.concatenate %72, %75, %78, %81, %83, %86, %89, %92, %95 in 0 : vector<8x256xf32>, vector<8x256xf32>, vector<8x256xf32>, vector<8x256xf32>, vector<8x256xf32>, vector<8x256xf32>, vector<8x256xf32>, vector<8x256xf32>, vector<8x256xf32> -> vector<72x256xf32>
      %97 = arith.truncf %96 : vector<72x256xf32> to vector<72x256xbf16>
      %98 = arith.index_cast %arg12 : i32 to index
      %c0_46 = arith.constant 0 : index
      %c0_47 = arith.constant 0 : index
      %99 = vector.load %arg7[%98, %c0_46, %c0_47] : memref<2x8x72xbf16, #tpu.memory_space<vmem>>, vector<1x8x72xbf16>
      %100 = vector.shape_cast %99 : vector<1x8x72xbf16> to vector<8x72xbf16>
      %cst_48 = arith.constant dense<0.000000e+00> : vector<8x256xf32>
      %101 = tpu.matmul %100, %97, %cst_48 {dimension_numbers = #tpu.dot_dimension_numbers<[1], [0], [0], [1], [0, 0, 1, 1], [], []>} : vector<8x72xbf16>, vector<72x256xbf16>, vector<8x256xf32> -> vector<8x256xf32>
      %102 = arith.index_cast %arg12 : i32 to index
      %c0_49 = arith.constant 0 : index
      %c0_50 = arith.constant 0 : index
      %103 = vector.load %arg8[%102, %c0_49, %c0_50] : memref<2x8x1xf32, #tpu.memory_space<vmem>>, vector<1x8x1xf32>
      %104 = vector.shape_cast %103 : vector<1x8x1xf32> to vector<8x1xf32>
      %105 = vector.broadcast %104 : vector<8x1xf32> to vector<8x256xf32>
      %106 = arith.addf %101, %105 : vector<8x256xf32>
      %cst_51 = arith.constant 0.000000e+00 : f32
      %107 = vector.broadcast %cst_51 : f32 to vector<8x256xf32>
      %108 = arith.subf %107, %106 : vector<8x256xf32>
      %109 = math.exp %108 : vector<8x256xf32>
      %cst_52 = arith.constant 1.000000e+00 : f32
      %110 = vector.broadcast %cst_52 : f32 to vector<8x256xf32>
      %111 = arith.addf %110, %109 : vector<8x256xf32>
      %112 = tpu.reciprocal %111 {approx = true} : vector<8x256xf32> -> vector<8x256xf32>
      %113 = arith.mulf %106, %112 : vector<8x256xf32>
      %114 = arith.addf %arg13, %113 : vector<8x256xf32>
      scf.yield %114 : vector<8x256xf32>
    }
    %c2_i32_27 = arith.constant 2 : i32
    %37 = tpu.concatenate %36, %16 in 0 : vector<8x256xf32>, vector<8x256xf32> -> vector<16x256xf32>
    %38 = arith.truncf %37 : vector<16x256xf32> to vector<16x256xbf16>
    %c0_28 = arith.constant 0 : index
    %c0_29 = arith.constant 0 : index
    %39 = vector.load %arg9[%c0_28, %c0_29] : memref<16x16xbf16, #tpu.memory_space<vmem>>, vector<16x16xbf16>
    %cst_30 = arith.constant dense<0.000000e+00> : vector<16x256xf32>
    %40 = tpu.matmul %39, %38, %cst_30 {dimension_numbers = #tpu.dot_dimension_numbers<[1], [0], [0], [1], [0, 0, 1, 1], [], []>} : vector<16x16xbf16>, vector<16x256xbf16>, vector<16x256xf32> -> vector<16x256xf32>
    %c0_31 = arith.constant 0 : index
    %c0_32 = arith.constant 0 : index
    %41 = vector.load %arg10[%c0_31, %c0_32] : memref<16x1xf32, #tpu.memory_space<vmem>>, vector<16x1xf32>
    %42 = vector.broadcast %41 : vector<16x1xf32> to vector<16x256xf32>
    %43 = arith.addf %40, %42 : vector<16x256xf32>
    %cst_33 = arith.constant 0.000000e+00 : f32
    %44 = vector.broadcast %cst_33 : f32 to vector<16x256xf32>
    %45 = arith.subf %44, %43 : vector<16x256xf32>
    %46 = math.exp %45 : vector<16x256xf32>
    %cst_34 = arith.constant 1.000000e+00 : f32
    %47 = vector.broadcast %cst_34 : f32 to vector<16x256xf32>
    %48 = arith.addf %47, %46 : vector<16x256xf32>
    %49 = tpu.reciprocal %48 {approx = true} : vector<16x256xf32> -> vector<16x256xf32>
    %50 = arith.mulf %43, %49 : vector<16x256xf32>
    %51 = vector.shape_cast %50 : vector<16x256xf32> to vector<1x16x256xf32>
    %c0_35 = arith.constant 0 : index
    %c0_36 = arith.constant 0 : index
    %c0_37 = arith.constant 0 : index
    %52 = vector.load %arg11[%c0_35, %c0_36, %c0_37] : memref<1x16x256xf32, #tpu.memory_space<vmem>>, vector<1x16x256xf32>
    tpu.vector_store %arg11[%c0_35, %c0_36, %c0_37], %51 {strides = array<i32>} : memref<1x16x256xf32, #tpu.memory_space<vmem>>, vector<1x16x256xf32>,
    return
  }
  func.func @transform_0(%arg0: i32) -> (i32, i32, i32) {
    %c0_i32 = arith.constant 0 : i32
    %c0_i32_0 = arith.constant 0 : i32
    %c0_i32_1 = arith.constant 0 : i32
    return %arg0, %c0_i32, %c0_i32_0 : i32, i32, i32
  }
  func.func @transform_1(%arg0: i32) -> (i32, i32, i32) {
    %c0_i32 = arith.constant 0 : i32
    %c0_i32_0 = arith.constant 0 : i32
    %c0_i32_1 = arith.constant 0 : i32
    %c0_i32_2 = arith.constant 0 : i32
    return %c0_i32, %c0_i32_0, %c0_i32_1 : i32, i32, i32
  }
  func.func @transform_2(%arg0: i32) -> (i32, i32) {
    %c0_i32 = arith.constant 0 : i32
    %c0_i32_0 = arith.constant 0 : i32
    %c0_i32_1 = arith.constant 0 : i32
    return %c0_i32, %c0_i32_0 : i32, i32
  }
  func.func @transform_3(%arg0: i32) -> (i32, i32) {
    %c0_i32 = arith.constant 0 : i32
    %c0_i32_0 = arith.constant 0 : i32
    %c0_i32_1 = arith.constant 0 : i32
    return %c0_i32, %c0_i32_0 : i32, i32
  }
  func.func @transform_4(%arg0: i32) -> (i32, i32, i32) {
    %c0_i32 = arith.constant 0 : i32
    %c0_i32_0 = arith.constant 0 : i32
    %c0_i32_1 = arith.constant 0 : i32
    %c0_i32_2 = arith.constant 0 : i32
    return %c0_i32, %c0_i32_0, %c0_i32_1 : i32, i32, i32
  }
  func.func @transform_5(%arg0: i32) -> (i32, i32, i32) {
    %c0_i32 = arith.constant 0 : i32
    %c0_i32_0 = arith.constant 0 : i32
    %c0_i32_1 = arith.constant 0 : i32
    %c0_i32_2 = arith.constant 0 : i32
    return %c0_i32, %c0_i32_0, %c0_i32_1 : i32, i32, i32
  }
  func.func @transform_6(%arg0: i32) -> (i32, i32, i32) {
    %c0_i32 = arith.constant 0 : i32
    %c0_i32_0 = arith.constant 0 : i32
    %c0_i32_1 = arith.constant 0 : i32
    %c0_i32_2 = arith.constant 0 : i32
    return %c0_i32, %c0_i32_0, %c0_i32_1 : i32, i32, i32
  }
  func.func @transform_7(%arg0: i32) -> (i32, i32, i32) {
    %c0_i32 = arith.constant 0 : i32
    %c0_i32_0 = arith.constant 0 : i32
    %c0_i32_1 = arith.constant 0 : i32
    %c0_i32_2 = arith.constant 0 : i32
    return %c0_i32, %c0_i32_0, %c0_i32_1 : i32, i32, i32
  }
  func.func @transform_8(%arg0: i32) -> (i32, i32) {
    %c0_i32 = arith.constant 0 : i32
    %c0_i32_0 = arith.constant 0 : i32
    %c0_i32_1 = arith.constant 0 : i32
    return %c0_i32, %c0_i32_0 : i32, i32
  }
  func.func @transform_9(%arg0: i32) -> (i32, i32) {
    %c0_i32 = arith.constant 0 : i32
    %c0_i32_0 = arith.constant 0 : i32
    %c0_i32_1 = arith.constant 0 : i32
    return %c0_i32, %c0_i32_0 : i32, i32
  }
  func.func @transform_10(%arg0: i32) -> (i32, i32, i32) {
    %c0_i32 = arith.constant 0 : i32
    %c0_i32_0 = arith.constant 0 : i32
    %c0_i32_1 = arith.constant 0 : i32
    return %arg0, %c0_i32, %c0_i32_0 : i32, i32, i32
  }
}

</mosaic_0001>

<llo_original>
// kernel: tpu_custom_call.1
$region0: #{tpu_custom_call.1}
  #allocation0 [shape = 'u32[]', space=smem, size = 0x4, offset = 0x4, fixed_abs, tag = 'smem constant byte address 0x4 - core index']
  #allocation1 [shape = 'u32[144,128]{1,0:T(1,128)}', space=vmem, size = 0x12000, scoped, tag = 'internal scratch']
  %s0 = inlined_call_operand.vmem [shape: f32[2,16,256], index: 0, kind: input, shape index: {}]
  %s1 = inlined_call_operand.hbm [shape: f32[9,1,256], index: 1, kind: input, shape index: {}]
  %s2 = inlined_call_operand.vmem [shape: bf16[16,16], index: 2, kind: input, shape index: {}]
  %s3 = inlined_call_operand.vmem [shape: f32[16,1], index: 3, kind: input, shape index: {}]
  %s4 = inlined_call_operand.vmem [shape: bf16[2,8,8], index: 4, kind: input, shape index: {}]
  %s5 = inlined_call_operand.vmem [shape: f32[2,8,1], index: 5, kind: input, shape index: {}]
  %s6 = inlined_call_operand.vmem [shape: bf16[2,8,72], index: 6, kind: input, shape index: {}]
  %s7 = inlined_call_operand.vmem [shape: f32[2,8,1], index: 7, kind: input, shape index: {}]
  %s8 = inlined_call_operand.vmem [shape: bf16[16,16], index: 8, kind: input, shape index: {}]
  %s9 = inlined_call_operand.vmem [shape: f32[16,1], index: 9, kind: input, shape index: {}]
  %s10 = inlined_call_operand.hbm [shape: f32[2,16,256], index: 10, kind: output, shape index: {}]
  %s11 = sld [smem:[#allocation0]]
  $region84: #{tpu_custom_call.1} parent=0
    _
  %s13 = ssub.s32 1, %s11
  %s14 = scalar_select 0, %s13, %s11
  $region1: #{tpu_custom_call.1} parent=0
    #allocation2 [shape = 'u8[9216]{0}', space=vmem, size = 0x2400, scoped, tag = 'input window, operand 1, single buffered']
    #allocation3 [shape = 's32[2]{0}', space=sflag, size = 0x8, scoped, tag = 'scoped memory for tpu_custom_call.1']
    #allocation4 [shape = 's32[2]{0}', space=sflag, size = 0x8, scoped, tag = 'scoped memory for tpu_custom_call.1']
    #allocation5 [shape = 'u8[32768]{0}', space=vmem, size = 0x8000, scoped, tag = 'output window, operand 0']
    %15 = vsyncpa [#allocation3], 0
    %16 = vsyncpa [#allocation4], 0
    %s17 = scalar_lea.sflag [#allocation4], 1
    %18 = vsyncpa %s17, 0
    loop: start=0, step=1, limit=4
    $region2: #{tpu_custom_call.1} parent=1 // loop_pre_header
      _
    $region3: #{tpu_custom_call.1} parent=1 // loop_header
      %s20 = sphi 0, %s24
      %p21 = scmp.ge.s32.totalorder %s20, 4
      %s30 = sphi 0, %s32
      %s33 = sphi 0, %s30
      %s34 = sphi 0, %s33
      %s50 = sphi 0, %s34
      %s54 = sphi 0, %s54
      %s56 = sphi 0, %s54
      %s57 = sphi 0, %s56
      %s71 = sphi 0, %s57
      %s75 = sphi 0, %s75
      %s77 = sphi 0, %s75
      %s78 = sphi 0, %s77
      %s92 = sphi 0, %s78
      %s96 = sphi 0, %s96
      %s98 = sphi 0, %s96
      %s99 = sphi 0, %s98
      %s113 = sphi 0, %s99
      %s117 = sphi 0, %s117
      %s119 = sphi 0, %s117
      %s120 = sphi 0, %s119
      %s134 = sphi 0, %s120
      %s138 = sphi 0, %s138
      %s140 = sphi 0, %s138
      %s141 = sphi 0, %s140
      %s155 = sphi 0, %s141
      %s159 = sphi 0, %s159
      %s161 = sphi 0, %s159
      %s162 = sphi 0, %s161
      %s176 = sphi 0, %s162
      %s180 = sphi 0, %s180
      %s182 = sphi 0, %s180
      %s183 = sphi 0, %s182
      %s197 = sphi 0, %s183
      %s201 = sphi 0, %s201
      %s203 = sphi 0, %s201
      %s204 = sphi 0, %s203
      %s218 = sphi 0, %s204
      %s222 = sphi 0, %s222
      %s224 = sphi 0, %s222
      %s225 = sphi 0, %s224
      %s239 = sphi 0, %s225
      %s245 = sphi 0, %s247
      %s248 = sphi 0, %s245
      %s249 = sphi 0, %s248
      %s265 = sphi 0, %s249
    $region4: #{tpu_custom_call.1} parent=1 // loop_header_branch
      %23 = sbr.rel (%p21) target = $region8
    $region5: #{tpu_custom_call.1} parent=1 // loop_body
      %s25 = ssub.s32 %s20, 1
      %s26 = ssub.s32 %s20, 2
      %s27 = sadd.s32 %s20, 1
      %s28 = ssub.s32 %s20, %s27
      %p29 = scmp.eq.s32.totalorder %s28, 0
      %s31 = sadd.s32 %s30, 1
      %s32 = scalar_select %p29, %s30, %s31
      %p35 = pneg %p29
      %p36 = scmp.eq.s32.totalorder %s20, 1
      %p37 = por %p35, %p36
      %p38 = scmp.ne.s32.totalorder %s30, %s33
      %p39 = scmp.eq.s32.totalorder %s20, 0
      %p40 = por %p38, %p39
      %p41 = scmp.ne.s32.totalorder %s30, %s33
      %p42 = scmp.eq.s32.totalorder %s25, 1
      %p43 = por %p41, %p42
      %p44 = scmp.ne.s32.totalorder %s33, %s34
      %p45 = scmp.eq.s32.totalorder %s25, 0
      %p46 = por %p44, %p45
      %p47 = scmp.ne.s32.totalorder %s33, %s34
      %p48 = scmp.eq.s32.totalorder %s26, 1
      %p49 = por %p47, %p48
      %p51 = scmp.ne.s32.totalorder %s34, %s50
      %p52 = scmp.eq.s32.totalorder %s26, 0
      %p53 = por %p51, %p52
      %s55 = sadd.s32 %s54, 1
      %p58 = scmp.eq.s32.totalorder %s20, 1
      %p59 = scmp.ne.s32.totalorder %s54, %s56
      %p60 = scmp.eq.s32.totalorder %s20, 0
      %p61 = por %p59, %p60
      %p62 = scmp.ne.s32.totalorder %s54, %s56
      %p63 = scmp.eq.s32.totalorder %s25, 1
      %p64 = por %p62, %p63
      %p65 = scmp.ne.s32.totalorder %s56, %s57
      %p66 = scmp.eq.s32.totalorder %s25, 0
      %p67 = por %p65, %p66
      %p68 = scmp.ne.s32.totalorder %s56, %s57
      %p69 = scmp.eq.s32.totalorder %s26, 1
      %p70 = por %p68, %p69
      %p72 = scmp.ne.s32.totalorder %s57, %s71
      %p73 = scmp.eq.s32.totalorder %s26, 0
      %p74 = por %p72, %p73
      %s76 = sadd.s32 %s75, 1
      %p79 = scmp.eq.s32.totalorder %s20, 1
      %p80 = scmp.ne.s32.totalorder %s75, %s77
      %p81 = scmp.eq.s32.totalorder %s20, 0
      %p82 = por %p80, %p81
      %p83 = scmp.ne.s32.totalorder %s75, %s77
      %p84 = scmp.eq.s32.totalorder %s25, 1
      %p85 = por %p83, %p84
      %p86 = scmp.ne.s32.totalorder %s77, %s78
      %p87 = scmp.eq.s32.totalorder %s25, 0
      %p88 = por %p86, %p87
      %p89 = scmp.ne.s32.totalorder %s77, %s78
      %p90 = scmp.eq.s32.totalorder %s26, 1
      %p91 = por %p89, %p90
      %p93 = scmp.ne.s32.totalorder %s78, %s92
      %p94 = scmp.eq.s32.totalorder %s26, 0
      %p95 = por %p93, %p94
      %s97 = sadd.s32 %s96, 1
      %p100 = scmp.eq.s32.totalorder %s20, 1
      %p101 = scmp.ne.s32.totalorder %s96, %s98
      %p102 = scmp.eq.s32.totalorder %s20, 0
      %p103 = por %p101, %p102
      %p104 = scmp.ne.s32.totalorder %s96, %s98
      %p105 = scmp.eq.s32.totalorder %s25, 1
      %p106 = por %p104, %p105
      %p107 = scmp.ne.s32.totalorder %s98, %s99
      %p108 = scmp.eq.s32.totalorder %s25, 0
      %p109 = por %p107, %p108
      %p110 = scmp.ne.s32.totalorder %s98, %s99
      %p111 = scmp.eq.s32.totalorder %s26, 1
      %p112 = por %p110, %p111
      %p114 = scmp.ne.s32.totalorder %s99, %s113
      %p115 = scmp.eq.s32.totalorder %s26, 0
      %p116 = por %p114, %p115
      %s118 = sadd.s32 %s117, 1
      %p121 = scmp.eq.s32.totalorder %s20, 1
      %p122 = scmp.ne.s32.totalorder %s117, %s119
      %p123 = scmp.eq.s32.totalorder %s20, 0
      %p124 = por %p122, %p123
      %p125 = scmp.ne.s32.totalorder %s117, %s119
      %p126 = scmp.eq.s32.totalorder %s25, 1
      %p127 = por %p125, %p126
      %p128 = scmp.ne.s32.totalorder %s119, %s120
      %p129 = scmp.eq.s32.totalorder %s25, 0
      %p130 = por %p128, %p129
      %p131 = scmp.ne.s32.totalorder %s119, %s120
      %p132 = scmp.eq.s32.totalorder %s26, 1
      %p133 = por %p131, %p132
      %p135 = scmp.ne.s32.totalorder %s120, %s134
      %p136 = scmp.eq.s32.totalorder %s26, 0
      %p137 = por %p135, %p136
      %s139 = sadd.s32 %s138, 1
      %p142 = scmp.eq.s32.totalorder %s20, 1
      %p143 = scmp.ne.s32.totalorder %s138, %s140
      %p144 = scmp.eq.s32.totalorder %s20, 0
      %p145 = por %p143, %p144
      %p146 = scmp.ne.s32.totalorder %s138, %s140
      %p147 = scmp.eq.s32.totalorder %s25, 1
      %p148 = por %p146, %p147
      %p149 = scmp.ne.s32.totalorder %s140, %s141
      %p150 = scmp.eq.s32.totalorder %s25, 0
      %p151 = por %p149, %p150
      %p152 = scmp.ne.s32.totalorder %s140, %s141
      %p153 = scmp.eq.s32.totalorder %s26, 1
      %p154 = por %p152, %p153
      %p156 = scmp.ne.s32.totalorder %s141, %s155
      %p157 = scmp.eq.s32.totalorder %s26, 0
      %p158 = por %p156, %p157
      %s160 = sadd.s32 %s159, 1
      %p163 = scmp.eq.s32.totalorder %s20, 1
      %p164 = scmp.ne.s32.totalorder %s159, %s161
      %p165 = scmp.eq.s32.totalorder %s20, 0
      %p166 = por %p164, %p165
      %p167 = scmp.ne.s32.totalorder %s159, %s161
      %p168 = scmp.eq.s32.totalorder %s25, 1
      %p169 = por %p167, %p168
      %p170 = scmp.ne.s32.totalorder %s161, %s162
      %p171 = scmp.eq.s32.totalorder %s25, 0
      %p172 = por %p170, %p171
      %p173 = scmp.ne.s32.totalorder %s161, %s162
      %p174 = scmp.eq.s32.totalorder %s26, 1
      %p175 = por %p173, %p174
      %p177 = scmp.ne.s32.totalorder %s162, %s176
      %p178 = scmp.eq.s32.totalorder %s26, 0
      %p179 = por %p177, %p178
      %s181 = sadd.s32 %s180, 1
      %p184 = scmp.eq.s32.totalorder %s20, 1
      %p185 = scmp.ne.s32.totalorder %s180, %s182
      %p186 = scmp.eq.s32.totalorder %s20, 0
      %p187 = por %p185, %p186
      %p188 = scmp.ne.s32.totalorder %s180, %s182
      %p189 = scmp.eq.s32.totalorder %s25, 1
      %p190 = por %p188, %p189
      %p191 = scmp.ne.s32.totalorder %s182, %s183
      %p192 = scmp.eq.s32.totalorder %s25, 0
      %p193 = por %p191, %p192
      %p194 = scmp.ne.s32.totalorder %s182, %s183
      %p195 = scmp.eq.s32.totalorder %s26, 1
      %p196 = por %p194, %p195
      %p198 = scmp.ne.s32.totalorder %s183, %s197
      %p199 = scmp.eq.s32.totalorder %s26, 0
      %p200 = por %p198, %p199
      %s202 = sadd.s32 %s201, 1
      %p205 = scmp.eq.s32.totalorder %s20, 1
      %p206 = scmp.ne.s32.totalorder %s201, %s203
      %p207 = scmp.eq.s32.totalorder %s20, 0
      %p208 = por %p206, %p207
      %p209 = scmp.ne.s32.totalorder %s201, %s203
      %p210 = scmp.eq.s32.totalorder %s25, 1
      %p211 = por %p209, %p210
      %p212 = scmp.ne.s32.totalorder %s203, %s204
      %p213 = scmp.eq.s32.totalorder %s25, 0
      %p214 = por %p212, %p213
      %p215 = scmp.ne.s32.totalorder %s203, %s204
      %p216 = scmp.eq.s32.totalorder %s26, 1
      %p217 = por %p215, %p216
      %p219 = scmp.ne.s32.totalorder %s204, %s218
      %p220 = scmp.eq.s32.totalorder %s26, 0
      %p221 = por %p219, %p220
      %s223 = sadd.s32 %s222, 1
      %p226 = scmp.eq.s32.totalorder %s20, 1
      %p227 = scmp.ne.s32.totalorder %s222, %s224
      %p228 = scmp.eq.s32.totalorder %s20, 0
      %p229 = por %p227, %p228
      %p230 = scmp.ne.s32.totalorder %s222, %s224
      %p231 = scmp.eq.s32.totalorder %s25, 1
      %p232 = por %p230, %p231
      %p233 = scmp.ne.s32.totalorder %s224, %s225
      %p234 = scmp.eq.s32.totalorder %s25, 0
      %p235 = por %p233, %p234
      %p236 = scmp.ne.s32.totalorder %s224, %s225
      %p237 = scmp.eq.s32.totalorder %s26, 1
      %p238 = por %p236, %p237
      %p240 = scmp.ne.s32.totalorder %s225, %s239
      %p241 = scmp.eq.s32.totalorder %s26, 0
      %p242 = por %p240, %p241
      %s243 = ssub.s32 %s20, %s27
      %p244 = scmp.eq.s32.totalorder %s243, 0
      %s246 = sadd.s32 %s245, 1
      %s247 = scalar_select %p244, %s245, %s246
      %p250 = pneg %p244
      %p251 = scmp.eq.s32.totalorder %s20, 1
      %p252 = por %p250, %p251
      %p253 = scmp.ne.s32.totalorder %s245, %s248
      %p254 = scmp.eq.s32.totalorder %s20, 0
      %p255 = por %p253, %p254
      %p256 = scmp.ne.s32.totalorder %s245, %s248
      %p257 = scmp.eq.s32.totalorder %s25, 1
      %p258 = por %p256, %p257
      %p259 = scmp.ne.s32.totalorder %s248, %s249
      %p260 = scmp.eq.s32.totalorder %s25, 0
      %p261 = por %p259, %p260
      %p262 = scmp.ne.s32.totalorder %s248, %s249
      %p263 = scmp.eq.s32.totalorder %s26, 1
      %p264 = por %p262, %p263
      %p266 = scmp.ne.s32.totalorder %s249, %s265
      %p267 = scmp.eq.s32.totalorder %s26, 0
      %p268 = por %p266, %p267
      %p269 = scmp.le.s32.totalorder 1, %s20
      %p270 = scmp.lt.s32.totalorder %s20, 3
      %p271 = pnand %p269, %p270
      %p272 = pneg %p271
      // Predicated region
      $region9: #{tpu_custom_call.1} parent=5 // pred_check
        _
      $region10: #{tpu_custom_call.1} parent=5 // pred_check_branch
        %274 = sbr.rel (%p271) target = $region12
      $region11: #{tpu_custom_call.1} parent=5 // pred_region
        %s275 = ssub.s32 %s20, 1
        // Predicated region
        $region13: #{tpu_custom_call.1} parent=11 // pred_check
          %p276 = pneg %p67
        $region14: #{tpu_custom_call.1} parent=11 // pred_check_branch
          %278 = sbr.rel (%p276) target = $region16
        $region15: #{tpu_custom_call.1} parent=11 // pred_region
          %s280 = ssub.s32 288, 288
          %281 = vsyncadd [#allocation3], %s280
          %s282 = sshll.u32 [#allocation2], 4
          %s283 = int_to_ptr.vmem [resolvable:$true] %s282
          %288 = dma.hbm_to_vmem [thread:$0]  %s1, 288, %s283, [#allocation3], 32, 32, 2
        $region16: #{tpu_custom_call.1} parent=11 // pred_fallthru
          _
        // Predicated region
        $region17: #{tpu_custom_call.1} parent=11 // pred_check
          %p289 = pneg %p88
        $region18: #{tpu_custom_call.1} parent=11 // pred_check_branch
          %291 = sbr.rel (%p289) target = $region20
        $region19: #{tpu_custom_call.1} parent=11 // pred_region
          _
        $region20: #{tpu_custom_call.1} parent=11 // pred_fallthru
          _
        // Predicated region
        $region21: #{tpu_custom_call.1} parent=11 // pred_check
          %p292 = pneg %p109
        $region22: #{tpu_custom_call.1} parent=11 // pred_check_branch
          %294 = sbr.rel (%p292) target = $region24
        $region23: #{tpu_custom_call.1} parent=11 // pred_region
          _
        $region24: #{tpu_custom_call.1} parent=11 // pred_fallthru
          _
        // Predicated region
        $region25: #{tpu_custom_call.1} parent=11 // pred_check
          %p295 = pneg %p130
        $region26: #{tpu_custom_call.1} parent=11 // pred_check_branch
          %297 = sbr.rel (%p295) target = $region28
        $region27: #{tpu_custom_call.1} parent=11 // pred_region
          _
        $region28: #{tpu_custom_call.1} parent=11 // pred_fallthru
          _
        // Predicated region
        $region29: #{tpu_custom_call.1} parent=11 // pred_check
          %p298 = pneg %p151
        $region30: #{tpu_custom_call.1} parent=11 // pred_check_branch
          %300 = sbr.rel (%p298) target = $region32
        $region31: #{tpu_custom_call.1} parent=11 // pred_region
          _
        $region32: #{tpu_custom_call.1} parent=11 // pred_fallthru
          _
        // Predicated region
        $region33: #{tpu_custom_call.1} parent=11 // pred_check
          %p301 = pneg %p172
        $region34: #{tpu_custom_call.1} parent=11 // pred_check_branch
          %303 = sbr.rel (%p301) target = $region36
        $region35: #{tpu_custom_call.1} parent=11 // pred_region
          _
        $region36: #{tpu_custom_call.1} parent=11 // pred_fallthru
          _
        // Predicated region
        $region37: #{tpu_custom_call.1} parent=11 // pred_check
          %p304 = pneg %p193
        $region38: #{tpu_custom_call.1} parent=11 // pred_check_branch
          %306 = sbr.rel (%p304) target = $region40
        $region39: #{tpu_custom_call.1} parent=11 // pred_region
          _
        $region40: #{tpu_custom_call.1} parent=11 // pred_fallthru
          _
        // Predicated region
        $region41: #{tpu_custom_call.1} parent=11 // pred_check
          %p307 = pneg %p214
        $region42: #{tpu_custom_call.1} parent=11 // pred_check_branch
          %309 = sbr.rel (%p307) target = $region44
        $region43: #{tpu_custom_call.1} parent=11 // pred_region
          _
        $region44: #{tpu_custom_call.1} parent=11 // pred_fallthru
          _
        // Predicated region
        $region45: #{tpu_custom_call.1} parent=11 // pred_check
          %p310 = pneg %p235
        $region46: #{tpu_custom_call.1} parent=11 // pred_check_branch
          %312 = sbr.rel (%p310) target = $region48
        $region47: #{tpu_custom_call.1} parent=11 // pred_region
          _
        $region48: #{tpu_custom_call.1} parent=11 // pred_fallthru
          _
      $region12: #{tpu_custom_call.1} parent=5 // pred_fallthru
        _
      %p313 = scmp.lt.s32.totalorder %s20, 2
      // Predicated region
      $region49: #{tpu_custom_call.1} parent=5 // pred_check
        %p314 = pneg %p313
      $region50: #{tpu_custom_call.1} parent=5 // pred_check_branch
        %316 = sbr.rel (%p314) target = $region52
      $region51: #{tpu_custom_call.1} parent=5 // pred_region
        // Predicated region
        $region53: #{tpu_custom_call.1} parent=51 // pred_check
          %p317 = pneg %p40
        $region54: #{tpu_custom_call.1} parent=51 // pred_check_branch
          %319 = sbr.rel (%p317) target = $region56
        $region55: #{tpu_custom_call.1} parent=51 // pred_region
          %p320 = scmp.lt.s32.totalorder %s20, 1
          %s321 = scalar_select %p320, %s20, 1
          %s322 = smul.addr %s321, 4
          %s323 = smul.addr %s322, 8
          %s324 = scalar_lea.vmem %s0, %s323
        $region56: #{tpu_custom_call.1} parent=51 // pred_fallthru
          _
      $region52: #{tpu_custom_call.1} parent=5 // pred_fallthru
        _
      %p325 = scmp.le.s32.totalorder 1, %s20
      %p326 = scmp.lt.s32.totalorder %s20, 3
      %p327 = pnand %p325, %p326
      %p328 = pneg %p327
      // Predicated region
      $region57: #{tpu_custom_call.1} parent=5 // pred_check
        _
      $region58: #{tpu_custom_call.1} parent=5 // pred_check_branch
        %330 = sbr.rel (%p327) target = $region60
      $region59: #{tpu_custom_call.1} parent=5 // pred_region
        %s331 = ssub.s32 %s20, 1
        // Predicated region
        $region61: #{tpu_custom_call.1} parent=59 // pred_check
          %p332 = pneg %p67
        $region62: #{tpu_custom_call.1} parent=59 // pred_check_branch
          %334 = sbr.rel (%p332) target = $region64
        $region63: #{tpu_custom_call.1} parent=59 // pred_region
          %335 = dma.done [#allocation3], 288
        $region64: #{tpu_custom_call.1} parent=59 // pred_fallthru
          _
        %p336 = scmp.lt.s32.totalorder %s25, 1
        %s337 = scalar_select %p336, %s25, 1
        %s338 = smul.addr %s337, 4
        %s339 = smul.addr %s338, 8
        %s340 = scalar_lea.vmem %s0, %s339
        %p341 = pneg %p46
        %p342 = pneg %p43
        %p343 = pneg %p67
        %p344 = pneg %p64
        %p345 = pneg %p88
        %p346 = pneg %p85
        %p347 = pneg %p109
        %p348 = pneg %p106
        %p349 = pneg %p130
        %p350 = pneg %p127
        %p351 = pneg %p151
        %p352 = pneg %p148
        %p353 = pneg %p172
        %p354 = pneg %p169
        %p355 = pneg %p193
        %p356 = pneg %p190
        %p357 = pneg %p214
        %p358 = pneg %p211
        %p359 = pneg %p235
        %p360 = pneg %p232
        %p361 = pneg %p261
        %p362 = pneg %p258
        %s363 = sand.u32 %s248, 1
        %s364 = scalar_lea.sflag [#allocation4], %s363
        %s365 = sand.u32 %s248, 1
        %s366 = smul.addr %s365, 32
        %s367 = scalar_lea.vmem [#allocation5], %s366
        %p368 = scmp.lt.s32.totalorder %s25, 1
        %s369 = scalar_select %p368, %s25, 1
        %s370 = smul.addr %s369, 4
        %s371 = smul.addr %s370, 8
        %s372 = scalar_lea.vmem %s0, %s371
        %v374 = vld [vmem:[%s372] sm:$0xff]
        %v375 = vld [vmem:[%s372 + $0x8] sm:$0xff]
        %v376 = vld [vmem:[%s372 + $0x10] sm:$0xff]
        %v377 = vld [vmem:[%s372 + $0x18] sm:$0xff]
        %v378 = vpack.c.bf16 %v376, %v374
        %v379 = vpack.c.bf16 %v377, %v375
        %v380 = vld [vmem:[%s2] sm:$0xf]
        %v381 = vld [vmem:[%s2 + $0x4] sm:$0xf]
        %v382 = vld [vmem:[%s3] sm:$0xff]
        %v383 = vld [vmem:[%s3 + $0x8] sm:$0xff]
        %385 = vset.pattern.permute.xlu0 0
        %386 = vperm.xlu0 %385, %v382
        %v387 = vpop.permute.xlu0 %386
        %390 = vset.pattern.permute.xlu0 0
        %391 = vperm.xlu0 %390, %v383
        %v392 = vpop.permute.xlu0 %391
        %v396 = vunpack.c.l.b16 %v380
        %v397 = vunpack.c.l.b16 %v381
        %v398 = vpack.c.b16 %v397, %v396
        %vm399 = vcmask 130048
        %v401 = vsel %vm399, %v398, 0
        %403 = vmatprep.subr.bf16.mxu0 %v379
        %404 = vmatpush1.bf16.msra.mxu0 %v378
        %405 = vmatprep.subr.bf16.mxu0 0
        %406 = vmatpush1.bf16.msra.mxu0 0
        %407 = vmatprep.subr.bf16.mxu0 0
        %408 = vmatpush1.bf16.msra.mxu0 0
        %409 = vmatprep.subr.bf16.mxu0 0
        %410 = vmatpush1.bf16.msra.mxu0 0
        %411 = vmatprep.subr.bf16.mxu0 0
        %412 = vmatpush1.bf16.msra.mxu0 0
        %413 = vmatprep.subr.bf16.mxu0 0
        %414 = vmatpush1.bf16.msra.mxu0 0
        %415 = vmatprep.subr.bf16.mxu0 0
        %416 = vmatpush1.bf16.msra.mxu0 0
        %417 = vmatprep.subr.bf16.mxu0 0
        %418 = vmatpush1.bf16.msra.mxu0 0
        %419 = vmatprep.subr.bf16.mxu0 0
        %420 = vmatpush1.bf16.msra.mxu0 0
        %421 = vmatprep.subr.bf16.mxu0 0
        %422 = vmatpush1.bf16.msra.mxu0 0
        %423 = vmatprep.subr.bf16.mxu0 0
        %424 = vmatpush1.bf16.msra.mxu0 0
        %425 = vmatprep.subr.bf16.mxu0 0
        %426 = vmatpush1.bf16.msra.mxu0 0
        %427 = vmatprep.subr.bf16.mxu0 0
        %428 = vmatpush1.bf16.msra.mxu0 0
        %429 = vmatprep.subr.bf16.mxu0 0
        %430 = vmatpush1.bf16.msra.mxu0 0
        %431 = vmatprep.subr.bf16.mxu0 0
        %432 = vmatpush1.bf16.msra.mxu0 0
        %433 = vmatprep.subr.bf16.mxu0 0
        %434 = vmatpush1.bf16.msra.mxu0 0
        %435 = vmatprep.mubr.bf16.mxu0 0
        %436 = vmatmul.mubr.bf16.gmra.mrb[0].mxu0 %v401
        %v437 = vpop.f32.mrb[0].mxu0
        %v438 = vadd.f32 %v387, %v437
        %v439 = vpop.f32.mrb[0].mxu0
        %v440 = vadd.f32 %v387, %v439
        %v441 = vpop.f32.mrb[0].mxu0
        %v442 = vadd.f32 %v392, %v441
        %v443 = vpop.f32.mrb[0].mxu0
        %v444 = vadd.f32 %v392, %v443
        %445 = vdwg.mxu0
        %v446 = vsub.f32 0.0, %v438
        %v447 = vsub.f32 0.0, %v440
        %v448 = vsub.f32 0.0, %v442
        %v449 = vsub.f32 0.0, %v444
        %v450 = vmul.f32 %v446, 1.442695
        %v451 = vpow.pop %v450
        %v452 = vmul.f32 %v447, 1.442695
        %v453 = vpow.pop %v452
        %v454 = vmul.f32 %v448, 1.442695
        %v455 = vpow.pop %v454
        %v456 = vmul.f32 %v449, 1.442695
        %v457 = vpow.pop %v456
        %v458 = vadd.f32 %v451, 1.0
        %v459 = vadd.f32 %v453, 1.0
        %v460 = vadd.f32 %v455, 1.0
        %v461 = vadd.f32 %v457, 1.0
        %v462 = vrcp.pop %v458
        %v463 = vrcp.pop %v459
        %v464 = vrcp.pop %v460
        %v465 = vrcp.pop %v461
        %v466 = vmul.f32 %v438, %v462
        %v467 = vmul.f32 %v440, %v463
        %v468 = vmul.f32 %v442, %v464
        %v469 = vmul.f32 %v444, %v465
        %v470 = vld [vmem:[#allocation2] sm:$0x3]
        %s471 = scalar_lea.vmem [#allocation2], 2
        %v472 = vld [vmem:[%s471] sm:$0x3]
        %s473 = scalar_lea.vmem [#allocation2], 4
        %v474 = vld [vmem:[%s473] sm:$0x3]
        %s475 = scalar_lea.vmem [#allocation2], 6
        %v476 = vld [vmem:[%s475] sm:$0x3]
        %s477 = scalar_lea.vmem [#allocation2], 8
        %v478 = vld [vmem:[%s477] sm:$0x3]
        %s479 = scalar_lea.vmem [#allocation2], 10
        %v480 = vld [vmem:[%s479] sm:$0x3]
        %s481 = scalar_lea.vmem [#allocation2], 12
        %v482 = vld [vmem:[%s481] sm:$0x3]
        %s483 = scalar_lea.vmem [#allocation2], 14
        %v484 = vld [vmem:[%s483] sm:$0x3]
        %s485 = scalar_lea.vmem [#allocation2], 16
        %v486 = vld [vmem:[%s485] sm:$0x3]
        loop: start=0, step=1, limit=2
        $region65: #{tpu_custom_call.1} parent=59 // loop_pre_header
          _
        $region66: #{tpu_custom_call.1} parent=59 // loop_header
          %s488 = sphi 0, %s492
          %p489 = scmp.ge.s32.totalorder %s488, 2
          %v493 = vphi %v466, %v830
          %v494 = vphi %v467, %v831
        $region67: #{tpu_custom_call.1} parent=59 // loop_header_branch
          %491 = sbr.rel (%p489) target = $region71
        $region68: #{tpu_custom_call.1} parent=59 // loop_body
          %s495 = smul.addr %s488, 4
          %s496 = scalar_lea.vmem %s4, %s495
          %v497 = vld [vmem:[%s496] sm:$0xf]
          %v498 = vpack.c.bf16 %v493, %v493
          %v499 = vpack.c.bf16 %v494, %v494
          %s500 = smul.u32 %s488, 8
          %s501 = scalar_lea.vmem %s5, %s500
          %v502 = vld [vmem:[%s501] sm:$0xff]
          %504 = vset.pattern.permute.xlu0 0
          %505 = vperm.xlu0 %504, %v502
          %v506 = vpop.permute.xlu0 %505
          %vm508 = vcmask 64512
          %v510 = vsel %vm508, %v497, 0
          %vm512 = vcmask 1043456
          %v514 = vsel %vm512, %v498, 0
          %v517 = vsel %vm512, %v499, 0
          %519 = vmatprep.subr.bf16.mxu0 %v517
          %520 = vmatpush1.bf16.msra.mxu0 %v514
          %521 = vmatprep.subr.bf16.mxu0 0
          %522 = vmatpush1.bf16.msra.mxu0 0
          %523 = vmatprep.subr.bf16.mxu0 0
          %524 = vmatpush1.bf16.msra.mxu0 0
          %525 = vmatprep.subr.bf16.mxu0 0
          %526 = vmatpush1.bf16.msra.mxu0 0
          %527 = vmatprep.subr.bf16.mxu0 0
          %528 = vmatpush1.bf16.msra.mxu0 0
          %529 = vmatprep.subr.bf16.mxu0 0
          %530 = vmatpush1.bf16.msra.mxu0 0
          %531 = vmatprep.subr.bf16.mxu0 0
          %532 = vmatpush1.bf16.msra.mxu0 0
          %533 = vmatprep.subr.bf16.mxu0 0
          %534 = vmatpush1.bf16.msra.mxu0 0
          %535 = vmatprep.subr.bf16.mxu0 0
          %536 = vmatpush1.bf16.msra.mxu0 0
          %537 = vmatprep.subr.bf16.mxu0 0
          %538 = vmatpush1.bf16.msra.mxu0 0
          %539 = vmatprep.subr.bf16.mxu0 0
          %540 = vmatpush1.bf16.msra.mxu0 0
          %541 = vmatprep.subr.bf16.mxu0 0
          %542 = vmatpush1.bf16.msra.mxu0 0
          %543 = vmatprep.subr.bf16.mxu0 0
          %544 = vmatpush1.bf16.msra.mxu0 0
          %545 = vmatprep.subr.bf16.mxu0 0
          %546 = vmatpush1.bf16.msra.mxu0 0
          %547 = vmatprep.subr.bf16.mxu0 0
          %548 = vmatpush1.bf16.msra.mxu0 0
          %549 = vmatprep.subr.bf16.mxu0 0
          %550 = vmatpush1.bf16.msra.mxu0 0
          %551 = vmatprep.mubr.bf16.mxu0 0
          %552 = vmatmul.mubr.bf16.gmra.mrb[0].mxu0 %v510
          %v553 = vpop.f32.mrb[0].mxu0
          %v554 = vadd.f32 %v506, %v553
          %v555 = vpop.f32.mrb[0].mxu0
          %v556 = vadd.f32 %v506, %v555
          %v557 = vpop.f32.mrb[0].mxu0
          %v558 = vpop.f32.mrb[0].mxu0
          %559 = vdwg.mxu0
          %v560 = vsub.f32 0.0, %v554
          %v561 = vsub.f32 0.0, %v556
          %v562 = vmul.f32 %v560, 1.442695
          %v563 = vpow.pop %v562
          %v564 = vmul.f32 %v561, 1.442695
          %v565 = vpow.pop %v564
          %v566 = vadd.f32 %v563, 1.0
          %v567 = vadd.f32 %v565, 1.0
          %v568 = vrcp.pop %v566
          %v569 = vrcp.pop %v567
          %v570 = vmul.f32 %v554, %v568
          %v571 = vmul.f32 %v556, %v569
          %572 = vrot.lane.b32.xlu0 %v570, 17
          %v573 = vpop.permute.xlu0 %572
          %574 = vrot.lane.b32.xlu0 %v571, 17
          %v575 = vpop.permute.xlu0 %574
          %v576 = vlaneseq
          %v577 = vand.u32 %v576, 127
          %vm578 = vcmp.lt.s32.totalorder %v577, 17
          %v579 = vsel %vm578, %v573, %v575
          %v580 = vsel %vm578, %v575, %v573
          %v582 = vlaneseq
          %v583 = vshrl.u32 %v582, 7
          %v584 = vsub.s32 0, %v583
          %v585 = vrot.slane %v470, %v584
          %v586 = vlaneseq
          %v587 = vshrl.u32 %v586, 7
          %v588 = vsub.s32 1, %v587
          %v589 = vrot.slane %v470, %v588
          %v592 = vmul.f32 %v580, %v585
          %v593 = vmul.f32 %v579, %v589
          %594 = vrot.lane.b32.xlu0 %v570, 16
          %v595 = vpop.permute.xlu0 %594
          %596 = vrot.lane.b32.xlu0 %v571, 16
          %v597 = vpop.permute.xlu0 %596
          %vm598 = vcmp.lt.s32.totalorder %v577, 16
          %v599 = vsel %vm598, %v595, %v597
          %v600 = vsel %vm598, %v597, %v595
          %v602 = vlaneseq
          %v603 = vshrl.u32 %v602, 7
          %v604 = vsub.s32 0, %v603
          %v605 = vrot.slane %v472, %v604
          %v606 = vlaneseq
          %v607 = vshrl.u32 %v606, 7
          %v608 = vsub.s32 1, %v607
          %v609 = vrot.slane %v472, %v608
          %v612 = vmul.f32 %v600, %v605
          %v613 = vmul.f32 %v599, %v609
          %614 = vrot.lane.b32.xlu0 %v570, 15
          %v615 = vpop.permute.xlu0 %614
          %616 = vrot.lane.b32.xlu0 %v571, 15
          %v617 = vpop.permute.xlu0 %616
          %vm618 = vcmp.lt.s32.totalorder %v577, 15
          %v619 = vsel %vm618, %v615, %v617
          %v620 = vsel %vm618, %v617, %v615
          %v622 = vlaneseq
          %v623 = vshrl.u32 %v622, 7
          %v624 = vsub.s32 0, %v623
          %v625 = vrot.slane %v474, %v624
          %v626 = vlaneseq
          %v627 = vshrl.u32 %v626, 7
          %v628 = vsub.s32 1, %v627
          %v629 = vrot.slane %v474, %v628
          %v632 = vmul.f32 %v620, %v625
          %v633 = vmul.f32 %v619, %v629
          %634 = vrot.lane.b32.xlu0 %v570, 1
          %v635 = vpop.permute.xlu0 %634
          %636 = vrot.lane.b32.xlu0 %v571, 1
          %v637 = vpop.permute.xlu0 %636
          %vm638 = vcmp.lt.s32.totalorder %v577, 1
          %v639 = vsel %vm638, %v635, %v637
          %v640 = vsel %vm638, %v637, %v635
          %v642 = vlaneseq
          %v643 = vshrl.u32 %v642, 7
          %v644 = vsub.s32 0, %v643
          %v645 = vrot.slane %v476, %v644
          %v646 = vlaneseq
          %v647 = vshrl.u32 %v646, 7
          %v648 = vsub.s32 1, %v647
          %v649 = vrot.slane %v476, %v648
          %v652 = vmul.f32 %v640, %v645
          %v653 = vmul.f32 %v639, %v649
          %v655 = vlaneseq
          %v656 = vshrl.u32 %v655, 7
          %v657 = vsub.s32 0, %v656
          %v658 = vrot.slane %v478, %v657
          %v659 = vlaneseq
          %v660 = vshrl.u32 %v659, 7
          %v661 = vsub.s32 1, %v660
          %v662 = vrot.slane %v478, %v661
          %v665 = vmul.f32 %v570, %v658
          %v666 = vmul.f32 %v571, %v662
          %667 = vrot.lane.b32.xlu0 %v570, 127
          %v668 = vpop.permute.xlu0 %667
          %669 = vrot.lane.b32.xlu0 %v571, 127
          %v670 = vpop.permute.xlu0 %669
          %vm671 = vcmp.lt.s32.totalorder %v577, 127
          %v672 = vsel %vm671, %v668, %v670
          %v673 = vsel %vm671, %v670, %v668
          %v675 = vlaneseq
          %v676 = vshrl.u32 %v675, 7
          %v677 = vsub.s32 0, %v676
          %v678 = vrot.slane %v480, %v677
          %v679 = vlaneseq
          %v680 = vshrl.u32 %v679, 7
          %v681 = vsub.s32 1, %v680
          %v682 = vrot.slane %v480, %v681
          %v685 = vmul.f32 %v672, %v678
          %v686 = vmul.f32 %v673, %v682
          %687 = vrot.lane.b32.xlu0 %v570, 113
          %v688 = vpop.permute.xlu0 %687
          %689 = vrot.lane.b32.xlu0 %v571, 113
          %v690 = vpop.permute.xlu0 %689
          %vm691 = vcmp.lt.s32.totalorder %v577, 113
          %v692 = vsel %vm691, %v688, %v690
          %v693 = vsel %vm691, %v690, %v688
          %v695 = vlaneseq
          %v696 = vshrl.u32 %v695, 7
          %v697 = vsub.s32 0, %v696
          %v698 = vrot.slane %v482, %v697
          %v699 = vlaneseq
          %v700 = vshrl.u32 %v699, 7
          %v701 = vsub.s32 1, %v700
          %v702 = vrot.slane %v482, %v701
          %v705 = vmul.f32 %v692, %v698
          %v706 = vmul.f32 %v693, %v702
          %707 = vrot.lane.b32.xlu0 %v570, 112
          %v708 = vpop.permute.xlu0 %707
          %709 = vrot.lane.b32.xlu0 %v571, 112
          %v710 = vpop.permute.xlu0 %709
          %vm711 = vcmp.lt.s32.totalorder %v577, 112
          %v712 = vsel %vm711, %v708, %v710
          %v713 = vsel %vm711, %v710, %v708
          %v715 = vlaneseq
          %v716 = vshrl.u32 %v715, 7
          %v717 = vsub.s32 0, %v716
          %v718 = vrot.slane %v484, %v717
          %v719 = vlaneseq
          %v720 = vshrl.u32 %v719, 7
          %v721 = vsub.s32 1, %v720
          %v722 = vrot.slane %v484, %v721
          %v725 = vmul.f32 %v712, %v718
          %v726 = vmul.f32 %v713, %v722
          %727 = vrot.lane.b32.xlu0 %v570, 111
          %v728 = vpop.permute.xlu0 %727
          %729 = vrot.lane.b32.xlu0 %v571, 111
          %v730 = vpop.permute.xlu0 %729
          %vm731 = vcmp.lt.s32.totalorder %v577, 111
          %v732 = vsel %vm731, %v728, %v730
          %v733 = vsel %vm731, %v730, %v728
          %v735 = vlaneseq
          %v736 = vshrl.u32 %v735, 7
          %v737 = vsub.s32 0, %v736
          %v738 = vrot.slane %v486, %v737
          %v739 = vlaneseq
          %v740 = vshrl.u32 %v739, 7
          %v741 = vsub.s32 1, %v740
          %v742 = vrot.slane %v486, %v741
          %v745 = vmul.f32 %v732, %v738
          %v746 = vmul.f32 %v733, %v742
          %v747 = vpack.c.bf16 %v612, %v592
          %v748 = vpack.c.bf16 %v613, %v593
          %v749 = vpack.c.bf16 %v652, %v632
          %v750 = vpack.c.bf16 %v653, %v633
          %v751 = vpack.c.bf16 %v685, %v665
          %v752 = vpack.c.bf16 %v686, %v666
          %v753 = vpack.c.bf16 %v725, %v705
          %v754 = vpack.c.bf16 %v726, %v706
          %v755 = vpack.c.bf16 %v745, %v745
          %v756 = vpack.c.bf16 %v746, %v746
          %s757 = smul.addr %s488, 4
          %s758 = scalar_lea.vmem %s6, %s757
          %v759 = vld [vmem:[%s758] sm:$0xf]
          %s760 = scalar_lea.vmem %s7, %s500
          %v761 = vld [vmem:[%s760] sm:$0xff]
          %763 = vset.pattern.permute.xlu0 0
          %764 = vperm.xlu0 %763, %v761
          %v765 = vpop.permute.xlu0 %764
          %vm767 = vcmask 588800
          %v769 = vsel %vm767, %v759, 0
          %v772 = vsel %vm512, %v755, 0
          %v775 = vsel %vm512, %v756, 0
          %777 = vmatprep.subr.bf16.mxu0 %v748
          %778 = vmatpush1.bf16.msra.mxu0 %v747
          %779 = vmatprep.subr.bf16.mxu0 %v750
          %780 = vmatpush1.bf16.msra.mxu0 %v749
          %781 = vmatprep.subr.bf16.mxu0 %v752
          %782 = vmatpush1.bf16.msra.mxu0 %v751
          %783 = vmatprep.subr.bf16.mxu0 %v754
          %784 = vmatpush1.bf16.msra.mxu0 %v753
          %785 = vmatprep.subr.bf16.mxu0 %v775
          %786 = vmatpush1.bf16.msra.mxu0 %v772
          %787 = vmatprep.subr.bf16.mxu0 0
          %788 = vmatpush1.bf16.msra.mxu0 0
          %789 = vmatprep.subr.bf16.mxu0 0
          %790 = vmatpush1.bf16.msra.mxu0 0
          %791 = vmatprep.subr.bf16.mxu0 0
          %792 = vmatpush1.bf16.msra.mxu0 0
          %793 = vmatprep.subr.bf16.mxu0 0
          %794 = vmatpush1.bf16.msra.mxu0 0
          %795 = vmatprep.subr.bf16.mxu0 0
          %796 = vmatpush1.bf16.msra.mxu0 0
          %797 = vmatprep.subr.bf16.mxu0 0
          %798 = vmatpush1.bf16.msra.mxu0 0
          %799 = vmatprep.subr.bf16.mxu0 0
          %800 = vmatpush1.bf16.msra.mxu0 0
          %801 = vmatprep.subr.bf16.mxu0 0
          %802 = vmatpush1.bf16.msra.mxu0 0
          %803 = vmatprep.subr.bf16.mxu0 0
          %804 = vmatpush1.bf16.msra.mxu0 0
          %805 = vmatprep.subr.bf16.mxu0 0
          %806 = vmatpush1.bf16.msra.mxu0 0
          %807 = vmatprep.subr.bf16.mxu0 0
          %808 = vmatpush1.bf16.msra.mxu0 0
          %809 = vmatprep.mubr.bf16.mxu0 0
          %810 = vmatmul.mubr.bf16.gmra.mrb[0].mxu0 %v769
          %v811 = vpop.f32.mrb[0].mxu0
          %v812 = vadd.f32 %v765, %v811
          %v813 = vpop.f32.mrb[0].mxu0
          %v814 = vadd.f32 %v765, %v813
          %v815 = vpop.f32.mrb[0].mxu0
          %v816 = vpop.f32.mrb[0].mxu0
          %817 = vdwg.mxu0
          %v818 = vsub.f32 0.0, %v812
          %v819 = vsub.f32 0.0, %v814
          %v820 = vmul.f32 %v818, 1.442695
          %v821 = vpow.pop %v820
          %v822 = vmul.f32 %v819, 1.442695
          %v823 = vpow.pop %v822
          %v824 = vadd.f32 %v821, 1.0
          %v825 = vadd.f32 %v823, 1.0
          %v826 = vrcp.pop %v824
          %v827 = vrcp.pop %v825
          %v828 = vmul.f32 %v812, %v826
          %v829 = vmul.f32 %v814, %v827
          %v830 = vadd.f32 %v493, %v828
          %v831 = vadd.f32 %v494, %v829
        $region69: #{tpu_custom_call.1} parent=59 // loop_footer
          %s492 = sadd.s32 1, %s488
        $region70: #{tpu_custom_call.1} parent=59 // loop_footer_branch
          %487 = sbr.rel target = $region66
        $region71: #{tpu_custom_call.1} parent=59 // loop_exit
          _
        %v832 = vpack.c.bf16 %v468, %v493
        %v833 = vpack.c.bf16 %v469, %v494
        %v834 = vld [vmem:[%s8] sm:$0xf]
        %v835 = vld [vmem:[%s8 + $0x4] sm:$0xf]
        %v836 = vld [vmem:[%s9] sm:$0xff]
        %v837 = vld [vmem:[%s9 + $0x8] sm:$0xff]
        %839 = vset.pattern.permute.xlu0 0
        %840 = vperm.xlu0 %839, %v836
        %v841 = vpop.permute.xlu0 %840
        %844 = vset.pattern.permute.xlu0 0
        %845 = vperm.xlu0 %844, %v837
        %v846 = vpop.permute.xlu0 %845
        %v850 = vunpack.c.l.b16 %v834
        %v851 = vunpack.c.l.b16 %v835
        %v852 = vpack.c.b16 %v851, %v850
        %v854 = vsel %vm399, %v852, 0
        %856 = vmatprep.subr.bf16.mxu0 %v833
        %857 = vmatpush1.bf16.msra.mxu0 %v832
        %858 = vmatprep.subr.bf16.mxu0 0
        %859 = vmatpush1.bf16.msra.mxu0 0
        %860 = vmatprep.subr.bf16.mxu0 0
        %861 = vmatpush1.bf16.msra.mxu0 0
        %862 = vmatprep.subr.bf16.mxu0 0
        %863 = vmatpush1.bf16.msra.mxu0 0
        %864 = vmatprep.subr.bf16.mxu0 0
        %865 = vmatpush1.bf16.msra.mxu0 0
        %866 = vmatprep.subr.bf16.mxu0 0
        %867 = vmatpush1.bf16.msra.mxu0 0
        %868 = vmatprep.subr.bf16.mxu0 0
        %869 = vmatpush1.bf16.msra.mxu0 0
        %870 = vmatprep.subr.bf16.mxu0 0
        %871 = vmatpush1.bf16.msra.mxu0 0
        %872 = vmatprep.subr.bf16.mxu0 0
        %873 = vmatpush1.bf16.msra.mxu0 0
        %874 = vmatprep.subr.bf16.mxu0 0
        %875 = vmatpush1.bf16.msra.mxu0 0
        %876 = vmatprep.subr.bf16.mxu0 0
        %877 = vmatpush1.bf16.msra.mxu0 0
        %878 = vmatprep.subr.bf16.mxu0 0
        %879 = vmatpush1.bf16.msra.mxu0 0
        %880 = vmatprep.subr.bf16.mxu0 0
        %881 = vmatpush1.bf16.msra.mxu0 0
        %882 = vmatprep.subr.bf16.mxu0 0
        %883 = vmatpush1.bf16.msra.mxu0 0
        %884 = vmatprep.subr.bf16.mxu0 0
        %885 = vmatpush1.bf16.msra.mxu0 0
        %886 = vmatprep.subr.bf16.mxu0 0
        %887 = vmatpush1.bf16.msra.mxu0 0
        %888 = vmatprep.mubr.bf16.mxu0 0
        %889 = vmatmul.mubr.bf16.gmra.mrb[0].mxu0 %v854
        %v890 = vpop.f32.mrb[0].mxu0
        %v891 = vadd.f32 %v841, %v890
        %v892 = vpop.f32.mrb[0].mxu0
        %v893 = vadd.f32 %v841, %v892
        %v894 = vpop.f32.mrb[0].mxu0
        %v895 = vadd.f32 %v846, %v894
        %v896 = vpop.f32.mrb[0].mxu0
        %v897 = vadd.f32 %v846, %v896
        %898 = vdwg.mxu0
        %v899 = vsub.f32 0.0, %v891
        %v900 = vsub.f32 0.0, %v893
        %v901 = vsub.f32 0.0, %v895
        %v902 = vsub.f32 0.0, %v897
        %v903 = vmul.f32 %v899, 1.442695
        %v904 = vpow.pop %v903
        %v905 = vmul.f32 %v900, 1.442695
        %v906 = vpow.pop %v905
        %v907 = vmul.f32 %v901, 1.442695
        %v908 = vpow.pop %v907
        %v909 = vmul.f32 %v902, 1.442695
        %v910 = vpow.pop %v909
        %v911 = vadd.f32 %v904, 1.0
        %v912 = vadd.f32 %v906, 1.0
        %v913 = vadd.f32 %v908, 1.0
        %v914 = vadd.f32 %v910, 1.0
        %v915 = vrcp.pop %v911
        %v916 = vrcp.pop %v912
        %v917 = vrcp.pop %v913
        %v918 = vrcp.pop %v914
        %v919 = vmul.f32 %v891, %v915
        %v920 = vmul.f32 %v893, %v916
        %v921 = vmul.f32 %v895, %v917
        %v922 = vmul.f32 %v897, %v918
        %923 = vst [vmem:[%s367] sm:$0xff] %v919
        %924 = vst [vmem:[%s367 + $0x8] sm:$0xff] %v920
        %925 = vst [vmem:[%s367 + $0x10] sm:$0xff] %v921
        %926 = vst [vmem:[%s367 + $0x18] sm:$0xff] %v922
        %s927 = sand.u32 %s248, 1
        %s928 = scalar_lea.sflag [#allocation4], %s927
        %s929 = sand.u32 %s248, 1
        %s930 = smul.addr %s929, 32
        %s931 = scalar_lea.vmem [#allocation5], %s930
        // Predicated region
        $region72: #{tpu_custom_call.1} parent=59 // pred_check
          %p932 = pneg %p258
        $region73: #{tpu_custom_call.1} parent=59 // pred_check_branch
          %934 = sbr.rel (%p932) target = $region75
        $region74: #{tpu_custom_call.1} parent=59 // pred_region
          %s936 = ssub.s32 512, 512
          %937 = vsyncadd %s928, %s936
          %s938 = smul.addr %s25, 4
          %s939 = smul.addr %s938, 128
          %s940 = scalar_lea.hbm %s10, %s939
          %s941 = sshll.u32 %s931, 4
          %s942 = int_to_ptr.vmem [resolvable:$true] %s941
          %947 = dma.vmem_to_hbm [thread:$0]  %s942, 512, %s940, %s928, 256, 256, 16
        $region75: #{tpu_custom_call.1} parent=59 // pred_fallthru
          _
      $region60: #{tpu_custom_call.1} parent=5 // pred_fallthru
        _
      %p948 = scmp.le.s32.totalorder 2, %s20
      // Predicated region
      $region76: #{tpu_custom_call.1} parent=5 // pred_check
        %p949 = pneg %p948
      $region77: #{tpu_custom_call.1} parent=5 // pred_check_branch
        %951 = sbr.rel (%p949) target = $region79
      $region78: #{tpu_custom_call.1} parent=5 // pred_region
        %s952 = ssub.s32 %s20, 2
        // Predicated region
        $region80: #{tpu_custom_call.1} parent=78 // pred_check
          %p953 = pneg %p264
        $region81: #{tpu_custom_call.1} parent=78 // pred_check_branch
          %955 = sbr.rel (%p953) target = $region83
        $region82: #{tpu_custom_call.1} parent=78 // pred_region
          %s956 = sand.u32 %s249, 1
          %s957 = scalar_lea.sflag [#allocation4], %s956
          %s958 = sand.u32 %s249, 1
          %s959 = smul.addr %s958, 32
          %s960 = scalar_lea.vmem [#allocation5], %s959
          %961 = dma.done %s957, 512
        $region83: #{tpu_custom_call.1} parent=78 // pred_fallthru
          _
      $region79: #{tpu_custom_call.1} parent=5 // pred_fallthru
        _
    $region6: #{tpu_custom_call.1} parent=1 // loop_footer
      %s24 = sadd.s32 1, %s20
    $region7: #{tpu_custom_call.1} parent=1 // loop_footer_branch
      %19 = sbr.rel target = $region3
    $region8: #{tpu_custom_call.1} parent=1 // loop_exit
      _
    %962 = vsyncpa [#allocation3], 1
    %s963 = scalar_lea.sflag [#allocation3], 1
    %964 = vsyncpa %s963, 1
    %965 = vsyncpa [#allocation4], 1
    %s966 = scalar_lea.sflag [#allocation4], 1
    %967 = vsyncpa %s966, 1

</llo_original>
